<compile_context>
chip_gen: v5e
topology: v5e:2x2
jax: 0.10.0
libtpu: 0.0.40
codegen_flags: <defaults>
</compile_context>

<pallas_src>
import functools

import jax
import jax.numpy as jnp
import numpy as np
from jax.experimental import pallas as pl
from jax.experimental.pallas import tpu as pltpu


# ----------------------------------------------------------------------------
# Fused forward kernel
# ----------------------------------------------------------------------------
def _daug_fused_kernel(scale_ref, wcon_ref,            # SMEM (1,) scalars
                       vis_ref, wvis_ref, bvis_ref,    # merged vision path (bf16, bf16, f32)
                       txt_ref, wt_ref, bt_ref,        # merged text path   (bf16, bf16, f32)
                       lab_ref,                        # [B, C] labels in {0,1} (f32)
                       loss_ref,                       # SMEM (1,) output
                       *, n_rep):
    scale = scale_ref[0]          # exp(logit_scale), runtime scalar
    w_con = wcon_ref[0]

    # --- vision ('add' heatmap): one K-concatenated bf16 MXU matmul -----------
    # x = 0.5*(img@Wv + hmp@Wvh) + 0.5*(bv+bvh); bias pre-summed in glue.
    x = jnp.dot(vis_ref[...], wvis_ref[...],
                preferred_element_type=jnp.float32) * 0.5 + bvis_ref[...]

    # --- text: one bf16 matmul for [reports ; class prompts (neg|pos)] --------
    t = jnp.dot(txt_ref[...], wt_ref[...],
                preferred_element_type=jnp.float32) + bt_ref[...]
    tr = t[:n_rep, :]             # report embeddings       [B, D]
    tc = t[n_rep:, :]             # class-prompt embeddings [2C, D] (neg | pos)

    def l2norm(v):
        return v * jax.lax.rsqrt(jnp.sum(v * v, axis=1, keepdims=True))

    x = l2norm(x)
    tr = l2norm(tr)
    tc = l2norm(tc)

    dn = (((1,), (1,)), ((), ()))  # contract on embed dim:  A @ B.T

    # --- CLIP contrastive loss on logits_text2img [B, B] ----------------------
    # Kept in f32 (tiny at these shapes; loss math must be f32 on v5e anyway).
    l_t2i = jax.lax.dot_general(tr, x, dn,
                                preferred_element_type=jnp.float32) * scale
    # diagonal via row-wise dot (no iota mask, no [B,B] mask multiply)
    diag = jnp.sum(tr * x, axis=1, keepdims=True) * scale              # [B, 1]

    m_r = jnp.max(l_t2i, axis=1, keepdims=True)
    lse_r = jnp.log(jnp.sum(jnp.exp(l_t2i - m_r), axis=1, keepdims=True)) + m_r
    m_c = jnp.max(l_t2i, axis=0, keepdims=True)
    lse_c = jnp.log(jnp.sum(jnp.exp(l_t2i - m_c), axis=0, keepdims=True)) + m_c
    # 0.5*(mean(lse_r - diag) + mean(lse_c - diag)) without any transpose:
    con_loss = 0.5 * (jnp.mean(lse_r) + jnp.mean(lse_c)) - jnp.mean(diag)

    # --- paired-class cross entropy (label_bce == False) ----------------------
    # single [B, 2C] matmul; columns 0..C-1 = negative prompts, C..2C-1 = positive
    lcls = jax.lax.dot_general(x, tc, dn,
                               preferred_element_type=jnp.float32) * scale
    C = lcls.shape[1] // 2
    l0 = lcls[:, :C]
    l1 = lcls[:, C:]
    lab = lab_ref[...]
    m = jnp.maximum(l0, l1)
    lse = jnp.log(jnp.exp(l0 - m) + jnp.exp(l1 - m)) + m
    z_t = jnp.where(lab > 0.5, l1, l0)
    cls_loss = jnp.mean(lse - z_t)

    loss_ref[0] = w_con * con_loss + (1.0 - w_con) * cls_loss


def daug_forward_fused(scale, w_con, vis_in, Wvis, b_half, txt_in, Wt, bt, labels):
    B = labels.shape[0]
    D = Wvis.shape[1]

    smem = pl.BlockSpec(memory_space=pltpu.MemorySpace.SMEM)
    vmem = pl.BlockSpec(memory_space=pltpu.MemorySpace.VMEM)

    # No grid: single invocation, whole arrays resident in VMEM (no pointless
    # double-buffering).  At real CLIP scale: add a "parallel" batch grid axis
    # (v7x dual TC), per-block partial losses, and set vmem_limit_bytes.
    loss = pl.pallas_call(
        functools.partial(_daug_fused_kernel, n_rep=B),
        out_shape=jax.ShapeDtypeStruct((1,), jnp.float32),
        in_specs=[
            smem, smem,          # exp(logit_scale), w_con
            vmem, vmem, vmem,    # [B, 2*IN] bf16, [2*IN, D] bf16, (1, D) f32
            vmem, vmem, vmem,    # [B+P, H] bf16, [H, D] bf16, (1, D) f32
            vmem,                # [B, C] labels f32
        ],
        out_specs=pl.BlockSpec(memory_space=pltpu.MemorySpace.SMEM),
    )(
        jnp.reshape(scale.astype(jnp.float32), (1,)),
        jnp.reshape(jnp.asarray(w_con, jnp.float32), (1,)),
        vis_in, Wvis, b_half.reshape(1, D),
        txt_in, Wt, bt.reshape(1, D),
        labels,
    )
    return loss[0]


# ----------------------------------------------------------------------------
# Full model (stand-in encoders + fused Pallas forward)
# ----------------------------------------------------------------------------
class DAugModelPallas:
    def __init__(self, key, *, img_c=3, img_hw=16, embed_dim=128,
                 vocab=100, text_hidden=32, logit_scale=2.0, w_con_loss=0.5):
        self.logit_scale = jnp.asarray(logit_scale, jnp.float32)  # frozen param
        self.w_con_loss = jnp.asarray(w_con_loss, jnp.float32)
        in_dim = img_c * img_hw * img_hw
        ks = jax.random.split(key, 7)
        s = 0.02
        # vision (branch 1) and vision_hmp (branch 2) stand-in projections
        self.Wv = jax.random.normal(ks[0], (in_dim, embed_dim), jnp.float32) * s
        self.bv = jax.random.normal(ks[1], (embed_dim,), jnp.float32) * s
        self.Wvh = jax.random.normal(ks[2], (in_dim, embed_dim), jnp.float32) * s
        self.bvh = jax.random.normal(ks[3], (embed_dim,), jnp.float32) * s
        # text stand-in: token embedding -> mean pool -> projection
        self.tok_emb = jax.random.normal(ks[4], (vocab, text_hidden), jnp.float32) * s
        self.Wt = jax.random.normal(ks[5], (text_hidden, embed_dim), jnp.float32) * s
        self.bt = jax.random.normal(ks[6], (embed_dim,), jnp.float32) * s

    # ---- glue (no clean Pallas equivalent: gather / reshape / concat / cast) --
    def _pool_text(self, token_ids):
        h = jnp.take(self.tok_emb, token_ids, axis=0)   # [N, L, H] gather
        return jnp.mean(h, axis=1)                      # [N, H]

    def forward_train(self, x_img, x_hmp, y):
        # TODO(synk): B and embed_dim are chosen (8, 128)-aligned here; unaligned
        # real shapes should be zero-padded in glue with a mask folded into the means.
        B = x_img.shape[0]
        flat_img = x_img.reshape(B, -1)                 # NCHW -> [B, C*H*W]
        flat_hmp = x_hmp.reshape(B, -1)
        # merged vision operands: [img|hmp] @ [Wv;Wvh], bf16 into the MXU
        vis_in = jnp.concatenate([flat_img, flat_hmp], axis=1).astype(jnp.bfloat16)
        Wvis = jnp.concatenate([self.Wv, self.Wvh], axis=0).astype(jnp.bfloat16)
        b_half = (0.5 * (self.bv + self.bvh)).astype(jnp.float32)

        rep_pooled = self._pool_text(y["reports"])      # [B, H]
        prm_pooled = self._pool_text(y["prompts"])      # [2C, H] interleaved
        # de-interleave (neg, pos) prompt rows -> [neg block ; pos block] (glue)
        prm_neg_first = jnp.concatenate(
            [prm_pooled[0::2], prm_pooled[1::2]], axis=0)
        # merged text operand: one matmul for reports + class prompts
        txt_in = jnp.concatenate([rep_pooled, prm_neg_first],
                                 axis=0).astype(jnp.bfloat16)

        scale = jnp.exp(self.logit_scale)               # runtime scalar, no recompile
        return daug_forward_fused(
            scale, self.w_con_loss,
            vis_in, Wvis, b_half,
            txt_in, self.Wt.astype(jnp.bfloat16), self.bt,
            y["labels"].astype(jnp.float32))


# ----------------------------------------------------------------------------
# Pure-JAX reference of the DAugModel training forward (correctness check).
# Same stand-in encoders, same bf16 MXU operands for the projections, loss and
# similarities in f32 (PyTorch op order).
# ----------------------------------------------------------------------------
def _ref_loss(e_img, e_hmp, t_report, t_class, labels, logit_scale, w_con):
    scale = jnp.exp(logit_scale)
    hi = jax.lax.Precision.HIGHEST
    x = (e_img + e_hmp) / 2.0
    x = x / jnp.linalg.norm(x, axis=1, keepdims=True)
    tr = t_report / jnp.linalg.norm(t_report, axis=1, keepdims=True)
    tc = t_class / jnp.linalg.norm(t_class, axis=1, keepdims=True)
    l_t2i = jnp.matmul(tr, x.T, precision=hi) * scale
    B = l_t2i.shape[0]

    def ce(logits, tgt):
        lse = jax.nn.logsumexp(logits, axis=1)
        return jnp.mean(lse - logits[jnp.arange(logits.shape[0]), tgt])

    con = 0.5 * (ce(l_t2i, jnp.arange(B)) + ce(l_t2i.T, jnp.arange(B)))
    lc = (jnp.matmul(x, tc.T, precision=hi) * scale).reshape(-1, 2)  # interleaved pairs
    tgt = labels.reshape(-1).astype(jnp.int32)
    cls = ce(lc, tgt)
    return w_con * con + (1.0 - w_con) * cls


if __name__ == "__main__":
    # B multiple of 8 (f32 sublane), embed dim multiple of 128 (lane).
    B, C_IMG, HW, D = 8, 3, 16, 128
    N_CLASSES, SEQ, VOCAB, HID = 4, 8, 100, 32

    key = jax.random.PRNGKey(0)
    k_model, k_img, k_hmp, k_rep, k_prm, k_lab = jax.random.split(key, 6)

    model = DAugModelPallas(k_model, img_c=C_IMG, img_hw=HW, embed_dim=D,
                            vocab=VOCAB, text_hidden=HID,
                            logit_scale=2.0, w_con_loss=0.5)

    x_img = jax.random.normal(k_img, (B, C_IMG, HW, HW), jnp.float32)
    x_hmp = jax.random.normal(k_hmp, (B, C_IMG, HW, HW), jnp.float32)
    y = {
        "reports": jax.random.randint(k_rep, (B, SEQ), 0, VOCAB),
        "prompts": jax.random.randint(k_prm, (2 * N_CLASSES, SEQ), 0, VOCAB),
        "labels": jax.random.randint(k_lab, (B, N_CLASSES), 0, 2),
    }

    loss = model.forward_train(x_img, x_hmp, y)
    jax.block_until_ready(loss)

    # reference check: identical stand-in encoder math (same bf16 MXU operands)
    flat_i = x_img.reshape(B, -1).astype(jnp.bfloat16)
    flat_h = x_hmp.reshape(B, -1).astype(jnp.bfloat16)
    e_img = jnp.dot(flat_i, model.Wv.astype(jnp.bfloat16),
                    preferred_element_type=jnp.float32) + model.bv
    e_hmp = jnp.dot(flat_h, model.Wvh.astype(jnp.bfloat16),
                    preferred_element_type=jnp.float32) + model.bvh
    rep_pooled = model._pool_text(y["reports"]).astype(jnp.bfloat16)
    prm_pooled = model._pool_text(y["prompts"]).astype(jnp.bfloat16)
    Wt_b = model.Wt.astype(jnp.bfloat16)
    t_report = jnp.dot(rep_pooled, Wt_b, preferred_element_type=jnp.float32) + model.bt
    t_class = jnp.dot(prm_pooled, Wt_b, preferred_element_type=jnp.float32) + model.bt

    ref = _ref_loss(e_img, e_hmp, t_report, t_class,
                    y["labels"].astype(jnp.float32),
                    model.logit_scale, model.w_con_loss)
    np.testing.assert_allclose(np.asarray(loss), np.asarray(ref),
                               rtol=1e-4, atol=1e-4)
    assert np.isfinite(np.asarray(loss))
    print("KERNEL_OK")
</pallas_src>

<mosaic_0001>
module attributes {stable_mosaic.version = 11 : i64} {
  func.func @_daug_fused_kernel(%arg0: memref<1xf32, #tpu.memory_space<smem>>, %arg1: memref<1xf32, #tpu.memory_space<smem>>, %arg2: memref<8x1536xbf16, #tpu.memory_space<vmem>>, %arg3: memref<1536x128xbf16, #tpu.memory_space<vmem>>, %arg4: memref<1x128xf32, #tpu.memory_space<vmem>>, %arg5: memref<16x32xbf16, #tpu.memory_space<vmem>>, %arg6: memref<32x128xbf16, #tpu.memory_space<vmem>>, %arg7: memref<1x128xf32, #tpu.memory_space<vmem>>, %arg8: memref<8x4xf32, #tpu.memory_space<vmem>>, %arg9: memref<1xf32, #tpu.memory_space<smem>>) attributes {dimension_semantics = [], scalar_prefetch = 0 : i64, scratch_operands = 0 : i64, tpu.core_type = #tpu.core_type<tc>} {
    %c0 = arith.constant 0 : index
    %0 = memref.load %arg0[%c0] : memref<1xf32, #tpu.memory_space<smem>>
    %c0_0 = arith.constant 0 : index
    %1 = memref.load %arg1[%c0_0] : memref<1xf32, #tpu.memory_space<smem>>
    %c0_1 = arith.constant 0 : index
    %c0_2 = arith.constant 0 : index
    %2 = vector.load %arg2[%c0_1, %c0_2] : memref<8x1536xbf16, #tpu.memory_space<vmem>>, vector<8x1536xbf16>
    %c0_3 = arith.constant 0 : index
    %c0_4 = arith.constant 0 : index
    %3 = vector.load %arg3[%c0_3, %c0_4] : memref<1536x128xbf16, #tpu.memory_space<vmem>>, vector<1536x128xbf16>
    %cst = arith.constant dense<0.000000e+00> : vector<8x128xf32>
    %4 = tpu.matmul %2, %3, %cst {dimension_numbers = #tpu.dot_dimension_numbers<[1], [0], [0], [1], [0, 0, 1, 1], [], []>} : vector<8x1536xbf16>, vector<1536x128xbf16>, vector<8x128xf32> -> vector<8x128xf32>
    %cst_5 = arith.constant 5.000000e-01 : f32
    %5 = vector.broadcast %cst_5 : f32 to vector<8x128xf32>
    %6 = arith.mulf %4, %5 : vector<8x128xf32>
    %c0_6 = arith.constant 0 : index
    %c0_7 = arith.constant 0 : index
    %7 = vector.load %arg4[%c0_6, %c0_7] : memref<1x128xf32, #tpu.memory_space<vmem>>, vector<1x128xf32>
    %8 = vector.broadcast %7 : vector<1x128xf32> to vector<8x128xf32>
    %9 = arith.addf %6, %8 : vector<8x128xf32>
    %c0_8 = arith.constant 0 : index
    %c0_9 = arith.constant 0 : index
    %10 = vector.load %arg5[%c0_8, %c0_9] : memref<16x32xbf16, #tpu.memory_space<vmem>>, vector<16x32xbf16>
    %c0_10 = arith.constant 0 : index
    %c0_11 = arith.constant 0 : index
    %11 = vector.load %arg6[%c0_10, %c0_11] : memref<32x128xbf16, #tpu.memory_space<vmem>>, vector<32x128xbf16>
    %cst_12 = arith.constant dense<0.000000e+00> : vector<16x128xf32>
    %12 = tpu.matmul %10, %11, %cst_12 {dimension_numbers = #tpu.dot_dimension_numbers<[1], [0], [0], [1], [0, 0, 1, 1], [], []>} : vector<16x32xbf16>, vector<32x128xbf16>, vector<16x128xf32> -> vector<16x128xf32>
    %c0_13 = arith.constant 0 : index
    %c0_14 = arith.constant 0 : index
    %13 = vector.load %arg7[%c0_13, %c0_14] : memref<1x128xf32, #tpu.memory_space<vmem>>, vector<1x128xf32>
    %14 = vector.broadcast %13 : vector<1x128xf32> to vector<16x128xf32>
    %15 = arith.addf %12, %14 : vector<16x128xf32>
    %16 = vector.extract_strided_slice %15 {offsets = [0, 0], sizes = [8, 128], strides = [1, 1]} : vector<16x128xf32> to vector<8x128xf32>
    %17 = vector.extract_strided_slice %15 {offsets = [8, 0], sizes = [8, 128], strides = [1, 1]} : vector<16x128xf32> to vector<8x128xf32>
    %18 = arith.mulf %9, %9 : vector<8x128xf32>
    %cst_15 = arith.constant dense<0.000000e+00> : vector<8xf32>
    %19 = vector.multi_reduction <add>, %18, %cst_15 [1] : vector<8x128xf32> to vector<8xf32>
    %20 = vector.shape_cast %19 : vector<8xf32> to vector<8x1xf32>
    %21 = math.rsqrt %20 : vector<8x1xf32>
    %22 = vector.broadcast %21 : vector<8x1xf32> to vector<8x128xf32>
    %23 = arith.mulf %9, %22 : vector<8x128xf32>
    %24 = arith.mulf %16, %16 : vector<8x128xf32>
    %cst_16 = arith.constant dense<0.000000e+00> : vector<8xf32>
    %25 = vector.multi_reduction <add>, %24, %cst_16 [1] : vector<8x128xf32> to vector<8xf32>
    %26 = vector.shape_cast %25 : vector<8xf32> to vector<8x1xf32>
    %27 = math.rsqrt %26 : vector<8x1xf32>
    %28 = vector.broadcast %27 : vector<8x1xf32> to vector<8x128xf32>
    %29 = arith.mulf %16, %28 : vector<8x128xf32>
    %30 = arith.mulf %17, %17 : vector<8x128xf32>
    %cst_17 = arith.constant dense<0.000000e+00> : vector<8xf32>
    %31 = vector.multi_reduction <add>, %30, %cst_17 [1] : vector<8x128xf32> to vector<8xf32>
    %32 = vector.shape_cast %31 : vector<8xf32> to vector<8x1xf32>
    %33 = math.rsqrt %32 : vector<8x1xf32>
    %34 = vector.broadcast %33 : vector<8x1xf32> to vector<8x128xf32>
    %35 = arith.mulf %17, %34 : vector<8x128xf32>
    %cst_18 = arith.constant dense<0.000000e+00> : vector<8x8xf32>
    %36 = tpu.matmul %29, %23, %cst_18 {dimension_numbers = #tpu.dot_dimension_numbers<[1], [1], [0], [0], [0, 0, 1, 0], [], []>} : vector<8x128xf32>, vector<8x128xf32>, vector<8x8xf32> -> vector<8x8xf32>
    %37 = vector.broadcast %0 : f32 to vector<8x8xf32>
    %38 = arith.mulf %36, %37 : vector<8x8xf32>
    %39 = arith.mulf %29, %23 : vector<8x128xf32>
    %cst_19 = arith.constant dense<0.000000e+00> : vector<8xf32>
    %40 = vector.multi_reduction <add>, %39, %cst_19 [1] : vector<8x128xf32> to vector<8xf32>
    %41 = vector.shape_cast %40 : vector<8xf32> to vector<8x1xf32>
    %42 = vector.broadcast %0 : f32 to vector<8x1xf32>
    %43 = arith.mulf %41, %42 : vector<8x1xf32>
    %cst_20 = arith.constant dense<0xFF800000> : vector<8xf32>
    %44 = vector.multi_reduction <maximumf>, %38, %cst_20 [1] : vector<8x8xf32> to vector<8xf32>
    %45 = vector.shape_cast %44 : vector<8xf32> to vector<8x1xf32>
    %46 = vector.broadcast %45 : vector<8x1xf32> to vector<8x8xf32>
    %47 = arith.subf %38, %46 : vector<8x8xf32>
    %48 = math.exp %47 : vector<8x8xf32>
    %cst_21 = arith.constant dense<0.000000e+00> : vector<8xf32>
    %49 = vector.multi_reduction <add>, %48, %cst_21 [1] : vector<8x8xf32> to vector<8xf32>
    %50 = vector.shape_cast %49 : vector<8xf32> to vector<8x1xf32>
    %51 = math.log %50 : vector<8x1xf32>
    %52 = arith.addf %51, %45 : vector<8x1xf32>
    %cst_22 = arith.constant dense<0xFF800000> : vector<8xf32>
    %53 = vector.multi_reduction <maximumf>, %38, %cst_22 [0] : vector<8x8xf32> to vector<8xf32>
    %54 = vector.shape_cast %53 : vector<8xf32> to vector<1x8xf32>
    %55 = vector.broadcast %54 : vector<1x8xf32> to vector<8x8xf32>
    %56 = arith.subf %38, %55 : vector<8x8xf32>
    %57 = math.exp %56 : vector<8x8xf32>
    %cst_23 = arith.constant dense<0.000000e+00> : vector<8xf32>
    %58 = vector.multi_reduction <add>, %57, %cst_23 [0] : vector<8x8xf32> to vector<8xf32>
    %59 = vector.shape_cast %58 : vector<8xf32> to vector<1x8xf32>
    %60 = math.log %59 : vector<1x8xf32>
    %61 = arith.addf %60, %54 : vector<1x8xf32>
    %62 = vector.shape_cast %52 : vector<8x1xf32> to vector<1x8x1xf32>
    %cst_24 = arith.constant dense<0.000000e+00> : vector<1xf32>
    %63 = vector.multi_reduction <add>, %62, %cst_24 [1, 2] : vector<1x8x1xf32> to vector<1xf32>
    %64 = vector.shape_cast %63 : vector<1xf32> to vector<1x1x1xf32>
    %65 = vector.extract %64[0, 0, 0] : f32 from vector<1x1x1xf32>
    %cst_25 = arith.constant 8.000000e+00 : f32
    %66 = arith.divf %65, %cst_25 : f32
    %67 = vector.shape_cast %61 : vector<1x8xf32> to vector<1x1x8xf32>
    %cst_26 = arith.constant dense<0.000000e+00> : vector<1xf32>
    %68 = vector.multi_reduction <add>, %67, %cst_26 [1, 2] : vector<1x1x8xf32> to vector<1xf32>
    %69 = vector.shape_cast %68 : vector<1xf32> to vector<1x1x1xf32>
    %70 = vector.extract %69[0, 0, 0] : f32 from vector<1x1x1xf32>
    %cst_27 = arith.constant 8.000000e+00 : f32
    %71 = arith.divf %70, %cst_27 : f32
    %72 = arith.addf %66, %71 : f32
    %cst_28 = arith.constant 5.000000e-01 : f32
    %73 = arith.mulf %cst_28, %72 : f32
    %74 = vector.shape_cast %43 : vector<8x1xf32> to vector<1x8x1xf32>
    %cst_29 = arith.constant dense<0.000000e+00> : vector<1xf32>
    %75 = vector.multi_reduction <add>, %74, %cst_29 [1, 2] : vector<1x8x1xf32> to vector<1xf32>
    %76 = vector.shape_cast %75 : vector<1xf32> to vector<1x1x1xf32>
    %77 = vector.extract %76[0, 0, 0] : f32 from vector<1x1x1xf32>
    %cst_30 = arith.constant 8.000000e+00 : f32
    %78 = arith.divf %77, %cst_30 : f32
    %79 = arith.subf %73, %78 : f32
    %cst_31 = arith.constant dense<0.000000e+00> : vector<8x8xf32>
    %80 = tpu.matmul %23, %35, %cst_31 {dimension_numbers = #tpu.dot_dimension_numbers<[1], [1], [0], [0], [0, 0, 1, 0], [], []>} : vector<8x128xf32>, vector<8x128xf32>, vector<8x8xf32> -> vector<8x8xf32>
    %81 = vector.broadcast %0 : f32 to vector<8x8xf32>
    %82 = arith.mulf %80, %81 : vector<8x8xf32>
    %83 = vector.extract_strided_slice %82 {offsets = [0, 0], sizes = [8, 4], strides = [1, 1]} : vector<8x8xf32> to vector<8x4xf32>
    %84 = vector.extract_strided_slice %82 {offsets = [0, 4], sizes = [8, 4], strides = [1, 1]} : vector<8x8xf32> to vector<8x4xf32>
    %c0_32 = arith.constant 0 : index
    %c0_33 = arith.constant 0 : index
    %85 = vector.load %arg8[%c0_32, %c0_33] : memref<8x4xf32, #tpu.memory_space<vmem>>, vector<8x4xf32>
    %86 = arith.maximumf %83, %84 : vector<8x4xf32>
    %87 = arith.subf %83, %86 : vector<8x4xf32>
    %88 = math.exp %87 : vector<8x4xf32>
    %89 = arith.subf %84, %86 : vector<8x4xf32>
    %90 = math.exp %89 : vector<8x4xf32>
    %91 = arith.addf %88, %90 : vector<8x4xf32>
    %92 = math.log %91 : vector<8x4xf32>
    %93 = arith.addf %92, %86 : vector<8x4xf32>
    %cst_34 = arith.constant 5.000000e-01 : f32
    %94 = vector.broadcast %cst_34 : f32 to vector<8x4xf32>
    %95 = arith.cmpf ogt, %85, %94 : vector<8x4xf32>
    %96 = arith.select %95, %84, %83 : vector<8x4xi1>, vector<8x4xf32>
    %97 = arith.subf %93, %96 : vector<8x4xf32>
    %98 = vector.shape_cast %97 : vector<8x4xf32> to vector<1x8x4xf32>
    %cst_35 = arith.constant dense<0.000000e+00> : vector<1xf32>
    %99 = vector.multi_reduction <add>, %98, %cst_35 [1, 2] : vector<1x8x4xf32> to vector<1xf32>
    %100 = vector.shape_cast %99 : vector<1xf32> to vector<1x1x1xf32>
    %101 = vector.extract %100[0, 0, 0] : f32 from vector<1x1x1xf32>
    %cst_36 = arith.constant 3.200000e+01 : f32
    %102 = arith.divf %101, %cst_36 : f32
    %103 = arith.mulf %1, %79 : f32
    %cst_37 = arith.constant 1.000000e+00 : f32
    %104 = arith.subf %cst_37, %1 : f32
    %105 = arith.mulf %104, %102 : f32
    %106 = arith.addf %103, %105 : f32
    %c0_38 = arith.constant 0 : index
    %107 = memref.load %arg9[%c0_38] : memref<1xf32, #tpu.memory_space<smem>>
    memref.store %106, %arg9[%c0_38] : memref<1xf32, #tpu.memory_space<smem>>
    return
  }
}

</mosaic_0001>

<llo_original>
// kernel: tpu_custom_call.1
$region0: #{tpu_custom_call.1}
  #allocation0 [shape = 'u32[]', space=smem, size = 0x4, offset = 0x4, fixed_abs, tag = 'smem constant byte address 0x4 - core index']
  #allocation1 [shape = 'u32[72,128]{1,0:T(1,128)}', space=vmem, size = 0x9000, scoped, tag = 'internal scratch']
  #allocation2 [shape = 'f32[1]{0:T(128)S(6)}', space=smem, size = 0x200, scoped, tag = 'scoped memory for tpu_custom_call.1']
  #allocation3 [shape = 'f32[1]{0:T(128)S(6)}', space=smem, size = 0x200, scoped, tag = 'scoped memory for tpu_custom_call.1']
  %s0 = inlined_call_operand.<no memory space> [shape: f32[1], index: 0, kind: input, shape index: {}]
  %s1 = inlined_call_operand.<no memory space> [shape: f32[1], index: 1, kind: input, shape index: {}]
  %s2 = inlined_call_operand.hbm [shape: bf16[8,1536], index: 2, kind: input, shape index: {}]
  %s3 = inlined_call_operand.hbm [shape: bf16[1536,128], index: 3, kind: input, shape index: {}]
  %s4 = inlined_call_operand.vmem [shape: f32[1,128], index: 4, kind: input, shape index: {}]
  %s5 = inlined_call_operand.vmem [shape: bf16[16,32], index: 5, kind: input, shape index: {}]
  %s6 = inlined_call_operand.hbm [shape: bf16[32,128], index: 6, kind: input, shape index: {}]
  %s7 = inlined_call_operand.vmem [shape: f32[1,128], index: 7, kind: input, shape index: {}]
  %s8 = inlined_call_operand.vmem [shape: f32[8,4], index: 8, kind: input, shape index: {}]
  %s9 = inlined_call_operand.hbm [shape: f32[1], index: 9, kind: output, shape index: {}]
  %s10 = sld [smem:[#allocation0]]
  $region58: #{tpu_custom_call.1} parent=0
    _
  %s12 = ssub.s32 1, %s10
  %s13 = scalar_select 0, %s12, %s10
  %14 = sst [smem:[#allocation2]] %s0
  %15 = sst [smem:[#allocation3]] %s1
  $region1: #{tpu_custom_call.1} parent=0
    #allocation4 [shape = 'u8[24576]{0}', space=vmem, size = 0x6000, scoped, tag = 'input window, operand 2, single buffered']
    #allocation5 [shape = 's32[1]{0}', space=sflag, size = 0x4, scoped, tag = 'scoped memory for tpu_custom_call.1']
    #allocation6 [shape = 's32[1]{0}', space=sflag, size = 0x4, scoped, tag = 'scoped memory for tpu_custom_call.1']
    #allocation7 [shape = 'u8[393216]{0}', space=vmem, size = 0x60000, scoped, tag = 'input window, operand 3, single buffered']
    #allocation8 [shape = 's32[1]{0}', space=sflag, size = 0x4, scoped, tag = 'scoped memory for tpu_custom_call.1']
    #allocation9 [shape = 'u8[8192]{0}', space=vmem, size = 0x2000, scoped, tag = 'input window, operand 6, single buffered']
    #allocation10 [shape = 'u8[512]{0}', space=smem, size = 0x200, scoped, tag = 'output window, operand 0, single buffered']
    %16 = vsyncpa [#allocation5], 0
    %17 = vsyncpa [#allocation8], 0
    %18 = vsyncpa [#allocation6], 0
    // Predicated region
    $region2: #{tpu_custom_call.1} parent=1 // pred_check
      _
    $region3: #{tpu_custom_call.1} parent=1 // pred_check_branch
      %20 = sbr.rel (0) target = $region5
    $region4: #{tpu_custom_call.1} parent=1 // pred_region
      _
    $region5: #{tpu_custom_call.1} parent=1 // pred_fallthru
      _
    // Predicated region
    $region6: #{tpu_custom_call.1} parent=1 // pred_check
      _
    $region7: #{tpu_custom_call.1} parent=1 // pred_check_branch
      %22 = sbr.rel (0) target = $region9
    $region8: #{tpu_custom_call.1} parent=1 // pred_region
      _
    $region9: #{tpu_custom_call.1} parent=1 // pred_fallthru
      _
    // Predicated region
    $region10: #{tpu_custom_call.1} parent=1 // pred_check
      _
    $region11: #{tpu_custom_call.1} parent=1 // pred_check_branch
      %24 = sbr.rel (0) target = $region13
    $region12: #{tpu_custom_call.1} parent=1 // pred_region
      %26 = vsyncadd [#allocation5], 0
      %s28 = sshll.u32 %s2, 4
      %s29 = int_to_ptr.hbm [resolvable:$true] %s28
      %s30 = sshll.u32 [#allocation4], 4
      %s31 = int_to_ptr.vmem [resolvable:$true] %s30
      %33 = dma.hbm_to_vmem [thread:$0]  %s29, 768, %s31, [#allocation5]
    $region13: #{tpu_custom_call.1} parent=1 // pred_fallthru
      _
    // Predicated region
    $region14: #{tpu_custom_call.1} parent=1 // pred_check
      _
    $region15: #{tpu_custom_call.1} parent=1 // pred_check_branch
      %35 = sbr.rel (0) target = $region17
    $region16: #{tpu_custom_call.1} parent=1 // pred_region
      %37 = vsyncadd [#allocation8], 0
      %s38 = sshll.u32 %s3, 4
      %s39 = int_to_ptr.hbm [resolvable:$true] %s38
      %s40 = sshll.u32 [#allocation7], 4
      %s41 = int_to_ptr.vmem [resolvable:$true] %s40
      %46 = dma.hbm_to_vmem [thread:$0]  %s39, 12288, %s41, [#allocation8], 64, 64, 4
    $region17: #{tpu_custom_call.1} parent=1 // pred_fallthru
      _
    // Predicated region
    $region18: #{tpu_custom_call.1} parent=1 // pred_check
      _
    $region19: #{tpu_custom_call.1} parent=1 // pred_check_branch
      %48 = sbr.rel (0) target = $region21
    $region20: #{tpu_custom_call.1} parent=1 // pred_region
      _
    $region21: #{tpu_custom_call.1} parent=1 // pred_fallthru
      _
    // Predicated region
    $region22: #{tpu_custom_call.1} parent=1 // pred_check
      _
    $region23: #{tpu_custom_call.1} parent=1 // pred_check_branch
      %50 = sbr.rel (0) target = $region25
    $region24: #{tpu_custom_call.1} parent=1 // pred_region
      _
    $region25: #{tpu_custom_call.1} parent=1 // pred_fallthru
      _
    // Predicated region
    $region26: #{tpu_custom_call.1} parent=1 // pred_check
      _
    $region27: #{tpu_custom_call.1} parent=1 // pred_check_branch
      %52 = sbr.rel (0) target = $region29
    $region28: #{tpu_custom_call.1} parent=1 // pred_region
      %54 = vsyncadd [#allocation8], 0
      %s55 = sshll.u32 %s6, 4
      %s56 = int_to_ptr.hbm [resolvable:$true] %s55
      %s57 = sshll.u32 [#allocation9], 4
      %s58 = int_to_ptr.vmem [resolvable:$true] %s57
      %63 = dma.hbm_to_vmem [thread:$0]  %s56, 256, %s58, [#allocation8], 64, 64, 4
    $region29: #{tpu_custom_call.1} parent=1 // pred_fallthru
      _
    // Predicated region
    $region30: #{tpu_custom_call.1} parent=1 // pred_check
      _
    $region31: #{tpu_custom_call.1} parent=1 // pred_check_branch
      %65 = sbr.rel (0) target = $region33
    $region32: #{tpu_custom_call.1} parent=1 // pred_region
      _
    $region33: #{tpu_custom_call.1} parent=1 // pred_fallthru
      _
    // Predicated region
    $region34: #{tpu_custom_call.1} parent=1 // pred_check
      _
    $region35: #{tpu_custom_call.1} parent=1 // pred_check_branch
      %67 = sbr.rel (0) target = $region37
    $region36: #{tpu_custom_call.1} parent=1 // pred_region
      _
    $region37: #{tpu_custom_call.1} parent=1 // pred_fallthru
      _
    // Predicated region
    $region38: #{tpu_custom_call.1} parent=1 // pred_check
      _
    $region39: #{tpu_custom_call.1} parent=1 // pred_check_branch
      %69 = sbr.rel (0) target = $region41
    $region40: #{tpu_custom_call.1} parent=1 // pred_region
      %71 = dma.done [#allocation5], 768
    $region41: #{tpu_custom_call.1} parent=1 // pred_fallthru
      _
    // Predicated region
    $region42: #{tpu_custom_call.1} parent=1 // pred_check
      _
    $region43: #{tpu_custom_call.1} parent=1 // pred_check_branch
      %73 = sbr.rel (0) target = $region45
    $region44: #{tpu_custom_call.1} parent=1 // pred_region
      %75 = dma.done [#allocation8], 12288
    $region45: #{tpu_custom_call.1} parent=1 // pred_fallthru
      _
    // Predicated region
    $region46: #{tpu_custom_call.1} parent=1 // pred_check
      _
    $region47: #{tpu_custom_call.1} parent=1 // pred_check_branch
      %77 = sbr.rel (0) target = $region49
    $region48: #{tpu_custom_call.1} parent=1 // pred_region
      %79 = dma.done [#allocation8], 256
    $region49: #{tpu_custom_call.1} parent=1 // pred_fallthru
      _
    %s81 = sld [smem:[#allocation2]]
    %s82 = sld [smem:[#allocation3]]
    %v83 = vld [vmem:[#allocation4] sm:$0xff]
    %v84 = vld [vmem:[#allocation4 + $0x8] sm:$0xff]
    %v85 = vld [vmem:[#allocation4 + $0x10] sm:$0xff]
    %v86 = vld [vmem:[#allocation4 + $0x18] sm:$0xff]
    %v87 = vld [vmem:[#allocation4 + $0x20] sm:$0xff]
    %v88 = vld [vmem:[#allocation4 + $0x28] sm:$0xff]
    %v89 = vld [vmem:[#allocation7] sm:$0xf]
    %v90 = vld [vmem:[#allocation7 + $0x4] sm:$0xf]
    %v91 = vld [vmem:[#allocation7 + $0x8] sm:$0xf]
    %v92 = vld [vmem:[#allocation7 + $0xc] sm:$0xf]
    %v93 = vld [vmem:[#allocation7 + $0x10] sm:$0xf]
    %v94 = vld [vmem:[#allocation7 + $0x14] sm:$0xf]
    %v95 = vld [vmem:[#allocation7 + $0x18] sm:$0xf]
    %v96 = vld [vmem:[#allocation7 + $0x1c] sm:$0xf]
    %v97 = vld [vmem:[#allocation7 + $0x20] sm:$0xf]
    %v98 = vld [vmem:[#allocation7 + $0x24] sm:$0xf]
    %v99 = vld [vmem:[#allocation7 + $0x28] sm:$0xf]
    %v100 = vld [vmem:[#allocation7 + $0x2c] sm:$0xf]
    %v101 = vld [vmem:[#allocation7 + $0x30] sm:$0xf]
    %v102 = vld [vmem:[#allocation7 + $0x34] sm:$0xf]
    %v103 = vld [vmem:[#allocation7 + $0x38] sm:$0xf]
    %v104 = vld [vmem:[#allocation7 + $0x3c] sm:$0xf]
    %v105 = vld [vmem:[#allocation7 + $0x40] sm:$0xf]
    %v106 = vld [vmem:[#allocation7 + $0x44] sm:$0xf]
    %v107 = vld [vmem:[#allocation7 + $0x48] sm:$0xf]
    %v108 = vld [vmem:[#allocation7 + $0x4c] sm:$0xf]
    %v109 = vld [vmem:[#allocation7 + $0x50] sm:$0xf]
    %v110 = vld [vmem:[#allocation7 + $0x54] sm:$0xf]
    %v111 = vld [vmem:[#allocation7 + $0x58] sm:$0xf]
    %v112 = vld [vmem:[#allocation7 + $0x5c] sm:$0xf]
    %v113 = vld [vmem:[#allocation7 + $0x60] sm:$0xf]
    %v114 = vld [vmem:[#allocation7 + $0x64] sm:$0xf]
    %v115 = vld [vmem:[#allocation7 + $0x68] sm:$0xf]
    %v116 = vld [vmem:[#allocation7 + $0x6c] sm:$0xf]
    %v117 = vld [vmem:[#allocation7 + $0x70] sm:$0xf]
    %v118 = vld [vmem:[#allocation7 + $0x74] sm:$0xf]
    %v119 = vld [vmem:[#allocation7 + $0x78] sm:$0xf]
    %v120 = vld [vmem:[#allocation7 + $0x7c] sm:$0xf]
    %v121 = vld [vmem:[#allocation7 + $0x80] sm:$0xf]
    %v122 = vld [vmem:[#allocation7 + $0x84] sm:$0xf]
    %v123 = vld [vmem:[#allocation7 + $0x88] sm:$0xf]
    %v124 = vld [vmem:[#allocation7 + $0x8c] sm:$0xf]
    %v125 = vld [vmem:[#allocation7 + $0x90] sm:$0xf]
    %v126 = vld [vmem:[#allocation7 + $0x94] sm:$0xf]
    %v127 = vld [vmem:[#allocation7 + $0x98] sm:$0xf]
    %v128 = vld [vmem:[#allocation7 + $0x9c] sm:$0xf]
    %v129 = vld [vmem:[#allocation7 + $0xa0] sm:$0xf]
    %v130 = vld [vmem:[#allocation7 + $0xa4] sm:$0xf]
    %v131 = vld [vmem:[#allocation7 + $0xa8] sm:$0xf]
    %v132 = vld [vmem:[#allocation7 + $0xac] sm:$0xf]
    %v133 = vld [vmem:[#allocation7 + $0xb0] sm:$0xf]
    %v134 = vld [vmem:[#allocation7 + $0xb4] sm:$0xf]
    %v135 = vld [vmem:[#allocation7 + $0xb8] sm:$0xf]
    %v136 = vld [vmem:[#allocation7 + $0xbc] sm:$0xf]
    %v137 = vld [vmem:[#allocation7 + $0xc0] sm:$0xf]
    %v138 = vld [vmem:[#allocation7 + $0xc4] sm:$0xf]
    %v139 = vld [vmem:[#allocation7 + $0xc8] sm:$0xf]
    %v140 = vld [vmem:[#allocation7 + $0xcc] sm:$0xf]
    %v141 = vld [vmem:[#allocation7 + $0xd0] sm:$0xf]
    %v142 = vld [vmem:[#allocation7 + $0xd4] sm:$0xf]
    %v143 = vld [vmem:[#allocation7 + $0xd8] sm:$0xf]
    %v144 = vld [vmem:[#allocation7 + $0xdc] sm:$0xf]
    %v145 = vld [vmem:[#allocation7 + $0xe0] sm:$0xf]
    %v146 = vld [vmem:[#allocation7 + $0xe4] sm:$0xf]
    %v147 = vld [vmem:[#allocation7 + $0xe8] sm:$0xf]
    %v148 = vld [vmem:[#allocation7 + $0xec] sm:$0xf]
    %v149 = vld [vmem:[#allocation7 + $0xf0] sm:$0xf]
    %v150 = vld [vmem:[#allocation7 + $0xf4] sm:$0xf]
    %v151 = vld [vmem:[#allocation7 + $0xf8] sm:$0xf]
    %v152 = vld [vmem:[#allocation7 + $0xfc] sm:$0xf]
    %v153 = vld [vmem:[#allocation7 + $0x100] sm:$0xf]
    %v154 = vld [vmem:[#allocation7 + $0x104] sm:$0xf]
    %v155 = vld [vmem:[#allocation7 + $0x108] sm:$0xf]
    %v156 = vld [vmem:[#allocation7 + $0x10c] sm:$0xf]
    %v157 = vld [vmem:[#allocation7 + $0x110] sm:$0xf]
    %v158 = vld [vmem:[#allocation7 + $0x114] sm:$0xf]
    %v159 = vld [vmem:[#allocation7 + $0x118] sm:$0xf]
    %v160 = vld [vmem:[#allocation7 + $0x11c] sm:$0xf]
    %v161 = vld [vmem:[#allocation7 + $0x120] sm:$0xf]
    %v162 = vld [vmem:[#allocation7 + $0x124] sm:$0xf]
    %v163 = vld [vmem:[#allocation7 + $0x128] sm:$0xf]
    %v164 = vld [vmem:[#allocation7 + $0x12c] sm:$0xf]
    %v165 = vld [vmem:[#allocation7 + $0x130] sm:$0xf]
    %v166 = vld [vmem:[#allocation7 + $0x134] sm:$0xf]
    %v167 = vld [vmem:[#allocation7 + $0x138] sm:$0xf]
    %v168 = vld [vmem:[#allocation7 + $0x13c] sm:$0xf]
    %v169 = vld [vmem:[#allocation7 + $0x140] sm:$0xf]
    %v170 = vld [vmem:[#allocation7 + $0x144] sm:$0xf]
    %v171 = vld [vmem:[#allocation7 + $0x148] sm:$0xf]
    %v172 = vld [vmem:[#allocation7 + $0x14c] sm:$0xf]
    %v173 = vld [vmem:[#allocation7 + $0x150] sm:$0xf]
    %v174 = vld [vmem:[#allocation7 + $0x154] sm:$0xf]
    %v175 = vld [vmem:[#allocation7 + $0x158] sm:$0xf]
    %v176 = vld [vmem:[#allocation7 + $0x15c] sm:$0xf]
    %v177 = vld [vmem:[#allocation7 + $0x160] sm:$0xf]
    %v178 = vld [vmem:[#allocation7 + $0x164] sm:$0xf]
    %v179 = vld [vmem:[#allocation7 + $0x168] sm:$0xf]
    %v180 = vld [vmem:[#allocation7 + $0x16c] sm:$0xf]
    %v181 = vld [vmem:[#allocation7 + $0x170] sm:$0xf]
    %v182 = vld [vmem:[#allocation7 + $0x174] sm:$0xf]
    %v183 = vld [vmem:[#allocation7 + $0x178] sm:$0xf]
    %v184 = vld [vmem:[#allocation7 + $0x17c] sm:$0xf]
    %v185 = vld [vmem:[#allocation7 + $0x180] sm:$0xf]
    %v186 = vld [vmem:[#allocation7 + $0x184] sm:$0xf]
    %v187 = vld [vmem:[#allocation7 + $0x188] sm:$0xf]
    %v188 = vld [vmem:[#allocation7 + $0x18c] sm:$0xf]
    %v189 = vld [vmem:[#allocation7 + $0x190] sm:$0xf]
    %v190 = vld [vmem:[#allocation7 + $0x194] sm:$0xf]
    %v191 = vld [vmem:[#allocation7 + $0x198] sm:$0xf]
    %v192 = vld [vmem:[#allocation7 + $0x19c] sm:$0xf]
    %v193 = vld [vmem:[#allocation7 + $0x1a0] sm:$0xf]
    %v194 = vld [vmem:[#allocation7 + $0x1a4] sm:$0xf]
    %v195 = vld [vmem:[#allocation7 + $0x1a8] sm:$0xf]
    %v196 = vld [vmem:[#allocation7 + $0x1ac] sm:$0xf]
    %v197 = vld [vmem:[#allocation7 + $0x1b0] sm:$0xf]
    %v198 = vld [vmem:[#allocation7 + $0x1b4] sm:$0xf]
    %v199 = vld [vmem:[#allocation7 + $0x1b8] sm:$0xf]
    %v200 = vld [vmem:[#allocation7 + $0x1bc] sm:$0xf]
    %v201 = vld [vmem:[#allocation7 + $0x1c0] sm:$0xf]
    %v202 = vld [vmem:[#allocation7 + $0x1c4] sm:$0xf]
    %v203 = vld [vmem:[#allocation7 + $0x1c8] sm:$0xf]
    %v204 = vld [vmem:[#allocation7 + $0x1cc] sm:$0xf]
    %v205 = vld [vmem:[#allocation7 + $0x1d0] sm:$0xf]
    %v206 = vld [vmem:[#allocation7 + $0x1d4] sm:$0xf]
    %v207 = vld [vmem:[#allocation7 + $0x1d8] sm:$0xf]
    %v208 = vld [vmem:[#allocation7 + $0x1dc] sm:$0xf]
    %v209 = vld [vmem:[#allocation7 + $0x1e0] sm:$0xf]
    %v210 = vld [vmem:[#allocation7 + $0x1e4] sm:$0xf]
    %v211 = vld [vmem:[#allocation7 + $0x1e8] sm:$0xf]
    %v212 = vld [vmem:[#allocation7 + $0x1ec] sm:$0xf]
    %v213 = vld [vmem:[#allocation7 + $0x1f0] sm:$0xf]
    %v214 = vld [vmem:[#allocation7 + $0x1f4] sm:$0xf]
    %v215 = vld [vmem:[#allocation7 + $0x1f8] sm:$0xf]
    %v216 = vld [vmem:[#allocation7 + $0x1fc] sm:$0xf]
    %v217 = vld [vmem:[#allocation7 + $0x200] sm:$0xf]
    %v218 = vld [vmem:[#allocation7 + $0x204] sm:$0xf]
    %v219 = vld [vmem:[#allocation7 + $0x208] sm:$0xf]
    %v220 = vld [vmem:[#allocation7 + $0x20c] sm:$0xf]
    %v221 = vld [vmem:[#allocation7 + $0x210] sm:$0xf]
    %v222 = vld [vmem:[#allocation7 + $0x214] sm:$0xf]
    %v223 = vld [vmem:[#allocation7 + $0x218] sm:$0xf]
    %v224 = vld [vmem:[#allocation7 + $0x21c] sm:$0xf]
    %v225 = vld [vmem:[#allocation7 + $0x220] sm:$0xf]
    %v226 = vld [vmem:[#allocation7 + $0x224] sm:$0xf]
    %v227 = vld [vmem:[#allocation7 + $0x228] sm:$0xf]
    %v228 = vld [vmem:[#allocation7 + $0x22c] sm:$0xf]
    %v229 = vld [vmem:[#allocation7 + $0x230] sm:$0xf]
    %v230 = vld [vmem:[#allocation7 + $0x234] sm:$0xf]
    %v231 = vld [vmem:[#allocation7 + $0x238] sm:$0xf]
    %v232 = vld [vmem:[#allocation7 + $0x23c] sm:$0xf]
    %v233 = vld [vmem:[#allocation7 + $0x240] sm:$0xf]
    %v234 = vld [vmem:[#allocation7 + $0x244] sm:$0xf]
    %v235 = vld [vmem:[#allocation7 + $0x248] sm:$0xf]
    %v236 = vld [vmem:[#allocation7 + $0x24c] sm:$0xf]
    %v237 = vld [vmem:[#allocation7 + $0x250] sm:$0xf]
    %v238 = vld [vmem:[#allocation7 + $0x254] sm:$0xf]
    %v239 = vld [vmem:[#allocation7 + $0x258] sm:$0xf]
    %v240 = vld [vmem:[#allocation7 + $0x25c] sm:$0xf]
    %v241 = vld [vmem:[#allocation7 + $0x260] sm:$0xf]
    %v242 = vld [vmem:[#allocation7 + $0x264] sm:$0xf]
    %v243 = vld [vmem:[#allocation7 + $0x268] sm:$0xf]
    %v244 = vld [vmem:[#allocation7 + $0x26c] sm:$0xf]
    %v245 = vld [vmem:[#allocation7 + $0x270] sm:$0xf]
    %v246 = vld [vmem:[#allocation7 + $0x274] sm:$0xf]
    %v247 = vld [vmem:[#allocation7 + $0x278] sm:$0xf]
    %v248 = vld [vmem:[#allocation7 + $0x27c] sm:$0xf]
    %v249 = vld [vmem:[#allocation7 + $0x280] sm:$0xf]
    %v250 = vld [vmem:[#allocation7 + $0x284] sm:$0xf]
    %v251 = vld [vmem:[#allocation7 + $0x288] sm:$0xf]
    %v252 = vld [vmem:[#allocation7 + $0x28c] sm:$0xf]
    %v253 = vld [vmem:[#allocation7 + $0x290] sm:$0xf]
    %v254 = vld [vmem:[#allocation7 + $0x294] sm:$0xf]
    %v255 = vld [vmem:[#allocation7 + $0x298] sm:$0xf]
    %v256 = vld [vmem:[#allocation7 + $0x29c] sm:$0xf]
    %v257 = vld [vmem:[#allocation7 + $0x2a0] sm:$0xf]
    %v258 = vld [vmem:[#allocation7 + $0x2a4] sm:$0xf]
    %v259 = vld [vmem:[#allocation7 + $0x2a8] sm:$0xf]
    %v260 = vld [vmem:[#allocation7 + $0x2ac] sm:$0xf]
    %v261 = vld [vmem:[#allocation7 + $0x2b0] sm:$0xf]
    %v262 = vld [vmem:[#allocation7 + $0x2b4] sm:$0xf]
    %v263 = vld [vmem:[#allocation7 + $0x2b8] sm:$0xf]
    %v264 = vld [vmem:[#allocation7 + $0x2bc] sm:$0xf]
    %v265 = vld [vmem:[#allocation7 + $0x2c0] sm:$0xf]
    %v266 = vld [vmem:[#allocation7 + $0x2c4] sm:$0xf]
    %v267 = vld [vmem:[#allocation7 + $0x2c8] sm:$0xf]
    %v268 = vld [vmem:[#allocation7 + $0x2cc] sm:$0xf]
    %v269 = vld [vmem:[#allocation7 + $0x2d0] sm:$0xf]
    %v270 = vld [vmem:[#allocation7 + $0x2d4] sm:$0xf]
    %v271 = vld [vmem:[#allocation7 + $0x2d8] sm:$0xf]
    %v272 = vld [vmem:[#allocation7 + $0x2dc] sm:$0xf]
    %v273 = vld [vmem:[#allocation7 + $0x2e0] sm:$0xf]
    %v274 = vld [vmem:[#allocation7 + $0x2e4] sm:$0xf]
    %v275 = vld [vmem:[#allocation7 + $0x2e8] sm:$0xf]
    %v276 = vld [vmem:[#allocation7 + $0x2ec] sm:$0xf]
    %v277 = vld [vmem:[#allocation7 + $0x2f0] sm:$0xf]
    %v278 = vld [vmem:[#allocation7 + $0x2f4] sm:$0xf]
    %v279 = vld [vmem:[#allocation7 + $0x2f8] sm:$0xf]
    %v280 = vld [vmem:[#allocation7 + $0x2fc] sm:$0xf]
    %v287 = vunpack.c.l.b16 %v83
    %v288 = vunpack.c.h.b16 %v83
    %v289 = vunpack.c.l.b16 %v84
    %v290 = vunpack.c.h.b16 %v84
    %v291 = vunpack.c.l.b16 %v85
    %v292 = vunpack.c.h.b16 %v85
    %v293 = vunpack.c.l.b16 %v86
    %v294 = vunpack.c.h.b16 %v86
    %v295 = vunpack.c.l.b16 %v87
    %v296 = vunpack.c.h.b16 %v87
    %v297 = vunpack.c.l.b16 %v88
    %v298 = vunpack.c.h.b16 %v88
    %v299 = vpack.c.b16 %v287, %v287
    %v300 = vpack.c.b16 %v288, %v288
    %v301 = vpack.c.b16 %v289, %v289
    %v302 = vpack.c.b16 %v290, %v290
    %v303 = vpack.c.b16 %v291, %v291
    %v304 = vpack.c.b16 %v292, %v292
    %v305 = vpack.c.b16 %v293, %v293
    %v306 = vpack.c.b16 %v294, %v294
    %v307 = vpack.c.b16 %v295, %v295
    %v308 = vpack.c.b16 %v296, %v296
    %v309 = vpack.c.b16 %v297, %v297
    %v310 = vpack.c.b16 %v298, %v298
    %v515 = vunpack.c.l.b16 %v89
    %v516 = vunpack.c.l.b16 %v90
    %v517 = vunpack.c.l.b16 %v91
    %v518 = vunpack.c.l.b16 %v92
    %v519 = vunpack.c.l.b16 %v93
    %v520 = vunpack.c.l.b16 %v94
    %v521 = vunpack.c.l.b16 %v95
    %v522 = vunpack.c.l.b16 %v96
    %v523 = vunpack.c.l.b16 %v97
    %v524 = vunpack.c.l.b16 %v98
    %v525 = vunpack.c.l.b16 %v99
    %v526 = vunpack.c.l.b16 %v100
    %v527 = vunpack.c.l.b16 %v101
    %v528 = vunpack.c.l.b16 %v102
    %v529 = vunpack.c.l.b16 %v103
    %v530 = vunpack.c.l.b16 %v104
    %v531 = vunpack.c.l.b16 %v105
    %v532 = vunpack.c.l.b16 %v106
    %v533 = vunpack.c.l.b16 %v107
    %v534 = vunpack.c.l.b16 %v108
    %v535 = vunpack.c.l.b16 %v109
    %v536 = vunpack.c.l.b16 %v110
    %v537 = vunpack.c.l.b16 %v111
    %v538 = vunpack.c.l.b16 %v112
    %v539 = vunpack.c.l.b16 %v113
    %v540 = vunpack.c.l.b16 %v114
    %v541 = vunpack.c.l.b16 %v115
    %v542 = vunpack.c.l.b16 %v116
    %v543 = vunpack.c.l.b16 %v117
    %v544 = vunpack.c.l.b16 %v118
    %v545 = vunpack.c.l.b16 %v119
    %v546 = vunpack.c.l.b16 %v120
    %v547 = vunpack.c.l.b16 %v121
    %v548 = vunpack.c.l.b16 %v122
    %v549 = vunpack.c.l.b16 %v123
    %v550 = vunpack.c.l.b16 %v124
    %v551 = vunpack.c.l.b16 %v125
    %v552 = vunpack.c.l.b16 %v126
    %v553 = vunpack.c.l.b16 %v127
    %v554 = vunpack.c.l.b16 %v128
    %v555 = vunpack.c.l.b16 %v129
    %v556 = vunpack.c.l.b16 %v130
    %v557 = vunpack.c.l.b16 %v131
    %v558 = vunpack.c.l.b16 %v132
    %v559 = vunpack.c.l.b16 %v133
    %v560 = vunpack.c.l.b16 %v134
    %v561 = vunpack.c.l.b16 %v135
    %v562 = vunpack.c.l.b16 %v136
    %v563 = vunpack.c.l.b16 %v137
    %v564 = vunpack.c.l.b16 %v138
    %v565 = vunpack.c.l.b16 %v139
    %v566 = vunpack.c.l.b16 %v140
    %v567 = vunpack.c.l.b16 %v141
    %v568 = vunpack.c.l.b16 %v142
    %v569 = vunpack.c.l.b16 %v143
    %v570 = vunpack.c.l.b16 %v144
    %v571 = vunpack.c.l.b16 %v145
    %v572 = vunpack.c.l.b16 %v146
    %v573 = vunpack.c.l.b16 %v147
    %v574 = vunpack.c.l.b16 %v148
    %v575 = vunpack.c.l.b16 %v149
    %v576 = vunpack.c.l.b16 %v150
    %v577 = vunpack.c.l.b16 %v151
    %v578 = vunpack.c.l.b16 %v152
    %v579 = vunpack.c.l.b16 %v153
    %v580 = vunpack.c.l.b16 %v154
    %v581 = vunpack.c.l.b16 %v155
    %v582 = vunpack.c.l.b16 %v156
    %v583 = vunpack.c.l.b16 %v157
    %v584 = vunpack.c.l.b16 %v158
    %v585 = vunpack.c.l.b16 %v159
    %v586 = vunpack.c.l.b16 %v160
    %v587 = vunpack.c.l.b16 %v161
    %v588 = vunpack.c.l.b16 %v162
    %v589 = vunpack.c.l.b16 %v163
    %v590 = vunpack.c.l.b16 %v164
    %v591 = vunpack.c.l.b16 %v165
    %v592 = vunpack.c.l.b16 %v166
    %v593 = vunpack.c.l.b16 %v167
    %v594 = vunpack.c.l.b16 %v168
    %v595 = vunpack.c.l.b16 %v169
    %v596 = vunpack.c.l.b16 %v170
    %v597 = vunpack.c.l.b16 %v171
    %v598 = vunpack.c.l.b16 %v172
    %v599 = vunpack.c.l.b16 %v173
    %v600 = vunpack.c.l.b16 %v174
    %v601 = vunpack.c.l.b16 %v175
    %v602 = vunpack.c.l.b16 %v176
    %v603 = vunpack.c.l.b16 %v177
    %v604 = vunpack.c.l.b16 %v178
    %v605 = vunpack.c.l.b16 %v179
    %v606 = vunpack.c.l.b16 %v180
    %v607 = vunpack.c.l.b16 %v181
    %v608 = vunpack.c.l.b16 %v182
    %v609 = vunpack.c.l.b16 %v183
    %v610 = vunpack.c.l.b16 %v184
    %v611 = vunpack.c.l.b16 %v185
    %v612 = vunpack.c.l.b16 %v186
    %v613 = vunpack.c.l.b16 %v187
    %v614 = vunpack.c.l.b16 %v188
    %v615 = vunpack.c.l.b16 %v189
    %v616 = vunpack.c.l.b16 %v190
    %v617 = vunpack.c.l.b16 %v191
    %v618 = vunpack.c.l.b16 %v192
    %v619 = vunpack.c.l.b16 %v193
    %v620 = vunpack.c.l.b16 %v194
    %v621 = vunpack.c.l.b16 %v195
    %v622 = vunpack.c.l.b16 %v196
    %v623 = vunpack.c.l.b16 %v197
    %v624 = vunpack.c.l.b16 %v198
    %v625 = vunpack.c.l.b16 %v199
    %v626 = vunpack.c.l.b16 %v200
    %v627 = vunpack.c.l.b16 %v201
    %v628 = vunpack.c.l.b16 %v202
    %v629 = vunpack.c.l.b16 %v203
    %v630 = vunpack.c.l.b16 %v204
    %v631 = vunpack.c.l.b16 %v205
    %v632 = vunpack.c.l.b16 %v206
    %v633 = vunpack.c.l.b16 %v207
    %v634 = vunpack.c.l.b16 %v208
    %v635 = vunpack.c.l.b16 %v209
    %v636 = vunpack.c.l.b16 %v210
    %v637 = vunpack.c.l.b16 %v211
    %v638 = vunpack.c.l.b16 %v212
    %v639 = vunpack.c.l.b16 %v213
    %v640 = vunpack.c.l.b16 %v214
    %v641 = vunpack.c.l.b16 %v215
    %v642 = vunpack.c.l.b16 %v216
    %v643 = vunpack.c.l.b16 %v217
    %v644 = vunpack.c.l.b16 %v218
    %v645 = vunpack.c.l.b16 %v219
    %v646 = vunpack.c.l.b16 %v220
    %v647 = vunpack.c.l.b16 %v221
    %v648 = vunpack.c.l.b16 %v222
    %v649 = vunpack.c.l.b16 %v223
    %v650 = vunpack.c.l.b16 %v224
    %v651 = vunpack.c.l.b16 %v225
    %v652 = vunpack.c.l.b16 %v226
    %v653 = vunpack.c.l.b16 %v227
    %v654 = vunpack.c.l.b16 %v228
    %v655 = vunpack.c.l.b16 %v229
    %v656 = vunpack.c.l.b16 %v230
    %v657 = vunpack.c.l.b16 %v231
    %v658 = vunpack.c.l.b16 %v232
    %v659 = vunpack.c.l.b16 %v233
    %v660 = vunpack.c.l.b16 %v234
    %v661 = vunpack.c.l.b16 %v235
    %v662 = vunpack.c.l.b16 %v236
    %v663 = vunpack.c.l.b16 %v237
    %v664 = vunpack.c.l.b16 %v238
    %v665 = vunpack.c.l.b16 %v239
    %v666 = vunpack.c.l.b16 %v240
    %v667 = vunpack.c.l.b16 %v241
    %v668 = vunpack.c.l.b16 %v242
    %v669 = vunpack.c.l.b16 %v243
    %v670 = vunpack.c.l.b16 %v244
    %v671 = vunpack.c.l.b16 %v245
    %v672 = vunpack.c.l.b16 %v246
    %v673 = vunpack.c.l.b16 %v247
    %v674 = vunpack.c.l.b16 %v248
    %v675 = vunpack.c.l.b16 %v249
    %v676 = vunpack.c.l.b16 %v250
    %v677 = vunpack.c.l.b16 %v251
    %v678 = vunpack.c.l.b16 %v252
    %v679 = vunpack.c.l.b16 %v253
    %v680 = vunpack.c.l.b16 %v254
    %v681 = vunpack.c.l.b16 %v255
    %v682 = vunpack.c.l.b16 %v256
    %v683 = vunpack.c.l.b16 %v257
    %v684 = vunpack.c.l.b16 %v258
    %v685 = vunpack.c.l.b16 %v259
    %v686 = vunpack.c.l.b16 %v260
    %v687 = vunpack.c.l.b16 %v261
    %v688 = vunpack.c.l.b16 %v262
    %v689 = vunpack.c.l.b16 %v263
    %v690 = vunpack.c.l.b16 %v264
    %v691 = vunpack.c.l.b16 %v265
    %v692 = vunpack.c.l.b16 %v266
    %v693 = vunpack.c.l.b16 %v267
    %v694 = vunpack.c.l.b16 %v268
    %v695 = vunpack.c.l.b16 %v269
    %v696 = vunpack.c.l.b16 %v270
    %v697 = vunpack.c.l.b16 %v271
    %v698 = vunpack.c.l.b16 %v272
    %v699 = vunpack.c.l.b16 %v273
    %v700 = vunpack.c.l.b16 %v274
    %v701 = vunpack.c.l.b16 %v275
    %v702 = vunpack.c.l.b16 %v276
    %v703 = vunpack.c.l.b16 %v277
    %v704 = vunpack.c.l.b16 %v278
    %v705 = vunpack.c.l.b16 %v279
    %v706 = vunpack.c.l.b16 %v280
    %v707 = vpack.c.b16 %v516, %v515
    %v708 = vpack.c.b16 %v518, %v517
    %v709 = vpack.c.b16 %v520, %v519
    %v710 = vpack.c.b16 %v522, %v521
    %v711 = vpack.c.b16 %v524, %v523
    %v712 = vpack.c.b16 %v526, %v525
    %v713 = vpack.c.b16 %v528, %v527
    %v714 = vpack.c.b16 %v530, %v529
    %v715 = vpack.c.b16 %v532, %v531
    %v716 = vpack.c.b16 %v534, %v533
    %v717 = vpack.c.b16 %v536, %v535
    %v718 = vpack.c.b16 %v538, %v537
    %v719 = vpack.c.b16 %v540, %v539
    %v720 = vpack.c.b16 %v542, %v541
    %v721 = vpack.c.b16 %v544, %v543
    %v722 = vpack.c.b16 %v546, %v545
    %v723 = vpack.c.b16 %v548, %v547
    %v724 = vpack.c.b16 %v550, %v549
    %v725 = vpack.c.b16 %v552, %v551
    %v726 = vpack.c.b16 %v554, %v553
    %v727 = vpack.c.b16 %v556, %v555
    %v728 = vpack.c.b16 %v558, %v557
    %v729 = vpack.c.b16 %v560, %v559
    %v730 = vpack.c.b16 %v562, %v561
    %v731 = vpack.c.b16 %v564, %v563
    %v732 = vpack.c.b16 %v566, %v565
    %v733 = vpack.c.b16 %v568, %v567
    %v734 = vpack.c.b16 %v570, %v569
    %v735 = vpack.c.b16 %v572, %v571
    %v736 = vpack.c.b16 %v574, %v573
    %v737 = vpack.c.b16 %v576, %v575
    %v738 = vpack.c.b16 %v578, %v577
    %v739 = vpack.c.b16 %v580, %v579
    %v740 = vpack.c.b16 %v582, %v581
    %v741 = vpack.c.b16 %v584, %v583
    %v742 = vpack.c.b16 %v586, %v585
    %v743 = vpack.c.b16 %v588, %v587
    %v744 = vpack.c.b16 %v590, %v589
    %v745 = vpack.c.b16 %v592, %v591
    %v746 = vpack.c.b16 %v594, %v593
    %v747 = vpack.c.b16 %v596, %v595
    %v748 = vpack.c.b16 %v598, %v597
    %v749 = vpack.c.b16 %v600, %v599
    %v750 = vpack.c.b16 %v602, %v601
    %v751 = vpack.c.b16 %v604, %v603
    %v752 = vpack.c.b16 %v606, %v605
    %v753 = vpack.c.b16 %v608, %v607
    %v754 = vpack.c.b16 %v610, %v609
    %v755 = vpack.c.b16 %v612, %v611
    %v756 = vpack.c.b16 %v614, %v613
    %v757 = vpack.c.b16 %v616, %v615
    %v758 = vpack.c.b16 %v618, %v617
    %v759 = vpack.c.b16 %v620, %v619
    %v760 = vpack.c.b16 %v622, %v621
    %v761 = vpack.c.b16 %v624, %v623
    %v762 = vpack.c.b16 %v626, %v625
    %v763 = vpack.c.b16 %v628, %v627
    %v764 = vpack.c.b16 %v630, %v629
    %v765 = vpack.c.b16 %v632, %v631
    %v766 = vpack.c.b16 %v634, %v633
    %v767 = vpack.c.b16 %v636, %v635
    %v768 = vpack.c.b16 %v638, %v637
    %v769 = vpack.c.b16 %v640, %v639
    %v770 = vpack.c.b16 %v642, %v641
    %v771 = vpack.c.b16 %v644, %v643
    %v772 = vpack.c.b16 %v646, %v645
    %v773 = vpack.c.b16 %v648, %v647
    %v774 = vpack.c.b16 %v650, %v649
    %v775 = vpack.c.b16 %v652, %v651
    %v776 = vpack.c.b16 %v654, %v653
    %v777 = vpack.c.b16 %v656, %v655
    %v778 = vpack.c.b16 %v658, %v657
    %v779 = vpack.c.b16 %v660, %v659
    %v780 = vpack.c.b16 %v662, %v661
    %v781 = vpack.c.b16 %v664, %v663
    %v782 = vpack.c.b16 %v666, %v665
    %v783 = vpack.c.b16 %v668, %v667
    %v784 = vpack.c.b16 %v670, %v669
    %v785 = vpack.c.b16 %v672, %v671
    %v786 = vpack.c.b16 %v674, %v673
    %v787 = vpack.c.b16 %v676, %v675
    %v788 = vpack.c.b16 %v678, %v677
    %v789 = vpack.c.b16 %v680, %v679
    %v790 = vpack.c.b16 %v682, %v681
    %v791 = vpack.c.b16 %v684, %v683
    %v792 = vpack.c.b16 %v686, %v685
    %v793 = vpack.c.b16 %v688, %v687
    %v794 = vpack.c.b16 %v690, %v689
    %v795 = vpack.c.b16 %v692, %v691
    %v796 = vpack.c.b16 %v694, %v693
    %v797 = vpack.c.b16 %v696, %v695
    %v798 = vpack.c.b16 %v698, %v697
    %v799 = vpack.c.b16 %v700, %v699
    %v800 = vpack.c.b16 %v702, %v701
    %v801 = vpack.c.b16 %v704, %v703
    %v802 = vpack.c.b16 %v706, %v705
    %899 = vmatpush.bf16.msra.mxu0 %v714
    %900 = vmatpush.bf16.msra.mxu0 %v713
    %901 = vmatpush.bf16.msra.mxu0 %v712
    %902 = vmatpush.bf16.msra.mxu0 %v711
    %903 = vmatpush.bf16.msra.mxu0 %v710
    %904 = vmatpush.bf16.msra.mxu0 %v709
    %905 = vmatpush.bf16.msra.mxu0 %v708
    %906 = vmatpush.bf16.msra.mxu0 %v707
    %907 = vmatmul.bf16.gmra.mxu0 %v299
    %v908 = vpop.f32.mrf.mxu0
    %v909 = vadd.f32 0.0, %v908
    %v910 = vpop.f32.mrf.mxu0
    %911 = vdwg.mxu0
    %912 = vmatpush.bf16.msra.mxu0 %v722
    %913 = vmatpush.bf16.msra.mxu0 %v721
    %914 = vmatpush.bf16.msra.mxu0 %v720
    %915 = vmatpush.bf16.msra.mxu0 %v719
    %916 = vmatpush.bf16.msra.mxu0 %v718
    %917 = vmatpush.bf16.msra.mxu0 %v717
    %918 = vmatpush.bf16.msra.mxu0 %v716
    %919 = vmatpush.bf16.msra.mxu0 %v715
    %920 = vmatmul.bf16.gmra.mxu0 %v300
    %v921 = vpop.f32.mrf.mxu0
    %v922 = vadd.f32 %v909, %v921
    %v923 = vpop.f32.mrf.mxu0
    %924 = vdwg.mxu0
    %925 = vmatpush.bf16.msra.mxu0 %v730
    %926 = vmatpush.bf16.msra.mxu0 %v729
    %927 = vmatpush.bf16.msra.mxu0 %v728
    %928 = vmatpush.bf16.msra.mxu0 %v727
    %929 = vmatpush.bf16.msra.mxu0 %v726
    %930 = vmatpush.bf16.msra.mxu0 %v725
    %931 = vmatpush.bf16.msra.mxu0 %v724
    %932 = vmatpush.bf16.msra.mxu0 %v723
    %933 = vmatmul.bf16.gmra.mxu0 %v301
    %v934 = vpop.f32.mrf.mxu0
    %v935 = vadd.f32 %v922, %v934
    %v936 = vpop.f32.mrf.mxu0
    %937 = vdwg.mxu0
    %938 = vmatpush.bf16.msra.mxu0 %v738
    %939 = vmatpush.bf16.msra.mxu0 %v737
    %940 = vmatpush.bf16.msra.mxu0 %v736
    %941 = vmatpush.bf16.msra.mxu0 %v735
    %942 = vmatpush.bf16.msra.mxu0 %v734
    %943 = vmatpush.bf16.msra.mxu0 %v733
    %944 = vmatpush.bf16.msra.mxu0 %v732
    %945 = vmatpush.bf16.msra.mxu0 %v731
    %946 = vmatmul.bf16.gmra.mxu0 %v302
    %v947 = vpop.f32.mrf.mxu0
    %v948 = vadd.f32 %v935, %v947
    %v949 = vpop.f32.mrf.mxu0
    %950 = vdwg.mxu0
    %951 = vmatpush.bf16.msra.mxu0 %v746
    %952 = vmatpush.bf16.msra.mxu0 %v745
    %953 = vmatpush.bf16.msra.mxu0 %v744
    %954 = vmatpush.bf16.msra.mxu0 %v743
    %955 = vmatpush.bf16.msra.mxu0 %v742
    %956 = vmatpush.bf16.msra.mxu0 %v741
    %957 = vmatpush.bf16.msra.mxu0 %v740
    %958 = vmatpush.bf16.msra.mxu0 %v739
    %959 = vmatmul.bf16.gmra.mxu0 %v303
    %v960 = vpop.f32.mrf.mxu0
    %v961 = vadd.f32 %v948, %v960
    %v962 = vpop.f32.mrf.mxu0
    %963 = vdwg.mxu0
    %964 = vmatpush.bf16.msra.mxu0 %v754
    %965 = vmatpush.bf16.msra.mxu0 %v753
    %966 = vmatpush.bf16.msra.mxu0 %v752
    %967 = vmatpush.bf16.msra.mxu0 %v751
    %968 = vmatpush.bf16.msra.mxu0 %v750
    %969 = vmatpush.bf16.msra.mxu0 %v749
    %970 = vmatpush.bf16.msra.mxu0 %v748
    %971 = vmatpush.bf16.msra.mxu0 %v747
    %972 = vmatmul.bf16.gmra.mxu0 %v304
    %v973 = vpop.f32.mrf.mxu0
    %v974 = vadd.f32 %v961, %v973
    %v975 = vpop.f32.mrf.mxu0
    %976 = vdwg.mxu0
    %977 = vmatpush.bf16.msra.mxu0 %v762
    %978 = vmatpush.bf16.msra.mxu0 %v761
    %979 = vmatpush.bf16.msra.mxu0 %v760
    %980 = vmatpush.bf16.msra.mxu0 %v759
    %981 = vmatpush.bf16.msra.mxu0 %v758
    %982 = vmatpush.bf16.msra.mxu0 %v757
    %983 = vmatpush.bf16.msra.mxu0 %v756
    %984 = vmatpush.bf16.msra.mxu0 %v755
    %985 = vmatmul.bf16.gmra.mxu0 %v305
    %v986 = vpop.f32.mrf.mxu0
    %v987 = vadd.f32 %v974, %v986
    %v988 = vpop.f32.mrf.mxu0
    %989 = vdwg.mxu0
    %990 = vmatpush.bf16.msra.mxu0 %v770
    %991 = vmatpush.bf16.msra.mxu0 %v769
    %992 = vmatpush.bf16.msra.mxu0 %v768
    %993 = vmatpush.bf16.msra.mxu0 %v767
    %994 = vmatpush.bf16.msra.mxu0 %v766
    %995 = vmatpush.bf16.msra.mxu0 %v765
    %996 = vmatpush.bf16.msra.mxu0 %v764
    %997 = vmatpush.bf16.msra.mxu0 %v763
    %998 = vmatmul.bf16.gmra.mxu0 %v306
    %v999 = vpop.f32.mrf.mxu0
    %v1000 = vadd.f32 %v987, %v999
    %v1001 = vpop.f32.mrf.mxu0
    %1002 = vdwg.mxu0
    %1003 = vmatpush.bf16.msra.mxu0 %v778
    %1004 = vmatpush.bf16.msra.mxu0 %v777
    %1005 = vmatpush.bf16.msra.mxu0 %v776
    %1006 = vmatpush.bf16.msra.mxu0 %v775
    %1007 = vmatpush.bf16.msra.mxu0 %v774
    %1008 = vmatpush.bf16.msra.mxu0 %v773
    %1009 = vmatpush.bf16.msra.mxu0 %v772
    %1010 = vmatpush.bf16.msra.mxu0 %v771
    %1011 = vmatmul.bf16.gmra.mxu0 %v307
    %v1012 = vpop.f32.mrf.mxu0
    %v1013 = vadd.f32 %v1000, %v1012
    %v1014 = vpop.f32.mrf.mxu0
    %1015 = vdwg.mxu0
    %1016 = vmatpush.bf16.msra.mxu0 %v786
    %1017 = vmatpush.bf16.msra.mxu0 %v785
    %1018 = vmatpush.bf16.msra.mxu0 %v784
    %1019 = vmatpush.bf16.msra.mxu0 %v783
    %1020 = vmatpush.bf16.msra.mxu0 %v782
    %1021 = vmatpush.bf16.msra.mxu0 %v781
    %1022 = vmatpush.bf16.msra.mxu0 %v780
    %1023 = vmatpush.bf16.msra.mxu0 %v779
    %1024 = vmatmul.bf16.gmra.mxu0 %v308
    %v1025 = vpop.f32.mrf.mxu0
    %v1026 = vadd.f32 %v1013, %v1025
    %v1027 = vpop.f32.mrf.mxu0
    %1028 = vdwg.mxu0
    %1029 = vmatpush.bf16.msra.mxu0 %v794
    %1030 = vmatpush.bf16.msra.mxu0 %v793
    %1031 = vmatpush.bf16.msra.mxu0 %v792
    %1032 = vmatpush.bf16.msra.mxu0 %v791
    %1033 = vmatpush.bf16.msra.mxu0 %v790
    %1034 = vmatpush.bf16.msra.mxu0 %v789
    %1035 = vmatpush.bf16.msra.mxu0 %v788
    %1036 = vmatpush.bf16.msra.mxu0 %v787
    %1037 = vmatmul.bf16.gmra.mxu0 %v309
    %v1038 = vpop.f32.mrf.mxu0
    %v1039 = vadd.f32 %v1026, %v1038
    %v1040 = vpop.f32.mrf.mxu0
    %1041 = vdwg.mxu0
    %1042 = vmatpush.bf16.msra.mxu0 %v802
    %1043 = vmatpush.bf16.msra.mxu0 %v801
    %1044 = vmatpush.bf16.msra.mxu0 %v800
    %1045 = vmatpush.bf16.msra.mxu0 %v799
    %1046 = vmatpush.bf16.msra.mxu0 %v798
    %1047 = vmatpush.bf16.msra.mxu0 %v797
    %1048 = vmatpush.bf16.msra.mxu0 %v796
    %1049 = vmatpush.bf16.msra.mxu0 %v795
    %1050 = vmatmul.bf16.gmra.mxu0 %v310
    %v1051 = vpop.f32.mrf.mxu0
    %v1052 = vadd.f32 %v1039, %v1051
    %v1053 = vpop.f32.mrf.mxu0
    %1054 = vdwg.mxu0
    %v1055 = vmul.f32 %v1052, 0.5
    %v1056 = vld [vmem:[%s4] sm:$0x1]
    %v1058 = vperm.slane %v1056, 0
    %v1060 = vadd.f32 %v1055, %v1058
    %v1061 = vld [vmem:[%s5] sm:$0xf]
    %v1062 = vld [vmem:[%s5 + $0x4] sm:$0xf]
    %v1063 = vld [vmem:[#allocation9] sm:$0xf]
    %v1064 = vld [vmem:[#allocation9 + $0x4] sm:$0xf]
    %v1065 = vld [vmem:[#allocation9 + $0x8] sm:$0xf]
    %v1066 = vld [vmem:[#allocation9 + $0xc] sm:$0xf]
    %v1067 = vld [vmem:[%s7] sm:$0x1]
    %v1069 = vperm.slane %v1067, 0
    %v1073 = vunpack.c.l.b16 %v1061
    %v1074 = vunpack.c.l.b16 %v1062
    %v1075 = vpack.c.b16 %v1074, %v1073
    %v1080 = vunpack.c.l.b16 %v1063
    %v1081 = vunpack.c.l.b16 %v1064
    %v1082 = vunpack.c.l.b16 %v1065
    %v1083 = vunpack.c.l.b16 %v1066
    %v1084 = vpack.c.b16 %v1081, %v1080
    %v1085 = vpack.c.b16 %v1083, %v1082
    %vm1088 = vcmask 261120
    %v1090 = vsel %vm1088, %v1075, 0
    %1092 = vmatpush.bf16.msra.mxu0 0
    %1093 = vmatpush.bf16.msra.mxu0 0
    %1094 = vmatpush.bf16.msra.mxu0 0
    %1095 = vmatpush.bf16.msra.mxu0 0
    %1096 = vmatpush.bf16.msra.mxu0 0
    %1097 = vmatpush.bf16.msra.mxu0 0
    %1098 = vmatpush.bf16.msra.mxu0 %v1085
    %1099 = vmatpush.bf16.msra.mxu0 %v1084
    %1100 = vmatmul.bf16.gmra.mxu0 %v1090
    %v1101 = vpop.f32.mrf.mxu0
    %v1102 = vadd.f32 %v1069, %v1101
    %v1103 = vpop.f32.mrf.mxu0
    %v1104 = vadd.f32 %v1069, %v1103
    %1105 = vdwg.mxu0
    %v1106 = vmul.f32 %v1060, %v1060
    %1107 = vadd.xlane.f32.xlu0 %v1106
    %v1108 = vpop.xlane.xlu0 %1107
    %v1109 = vrsqrt.pop %v1108
    %v1110 = vmul.f32 %v1109, %v1108
    %v1111 = vmul.f32 %v1110, %v1109
    %v1112 = vmul.f32 0.5, %v1111
    %v1113 = vsub.f32 1.5, %v1112
    %v1114 = vmul.f32 %v1109, %v1113
    %vm1115 = vweird.f32 %v1108
    %vm1116 = vweird.f32 %v1109
    %vm1117 = vmor %vm1115, %vm1116
    %v1118 = vsel %vm1117, %v1109, %v1114
    %v1119 = vmul.f32 %v1060, %v1118
    %v1120 = vmul.f32 %v1102, %v1102
    %1121 = vadd.xlane.f32.xlu0 %v1120
    %v1122 = vpop.xlane.xlu0 %1121
    %v1123 = vrsqrt.pop %v1122
    %v1124 = vmul.f32 %v1123, %v1122
    %v1125 = vmul.f32 %v1124, %v1123
    %v1126 = vmul.f32 0.5, %v1125
    %v1127 = vsub.f32 1.5, %v1126
    %v1128 = vmul.f32 %v1123, %v1127
    %vm1129 = vweird.f32 %v1122
    %vm1130 = vweird.f32 %v1123
    %vm1131 = vmor %vm1129, %vm1130
    %v1132 = vsel %vm1131, %v1123, %v1128
    %v1133 = vmul.f32 %v1102, %v1132
    %v1134 = vmul.f32 %v1104, %v1104
    %1135 = vadd.xlane.f32.xlu0 %v1134
    %v1136 = vpop.xlane.xlu0 %1135
    %v1137 = vrsqrt.pop %v1136
    %v1138 = vmul.f32 %v1137, %v1136
    %v1139 = vmul.f32 %v1138, %v1137
    %v1140 = vmul.f32 0.5, %v1139
    %v1141 = vsub.f32 1.5, %v1140
    %v1142 = vmul.f32 %v1137, %v1141
    %vm1143 = vweird.f32 %v1136
    %vm1144 = vweird.f32 %v1137
    %vm1145 = vmor %vm1143, %vm1144
    %v1146 = vsel %vm1145, %v1137, %v1142
    %v1147 = vmul.f32 %v1104, %v1146
    %1148 = vmatpush.xpose.msra.mxu0 0.0
    %1149 = vmatpush.xpose.msra.mxu0 0.0
    %1150 = vmatpush.xpose.msra.mxu0 0.0
    %1151 = vmatpush.xpose.msra.mxu0 0.0
    %1152 = vmatpush.xpose.msra.mxu0 0.0
    %1153 = vmatpush.xpose.msra.mxu0 0.0
    %1154 = vmatpush.xpose.msra.mxu0 0.0
    %1155 = vmatpush.xpose.msra.mxu0 0.0
    %1156 = vmatpush.xpose.msra.mxu0 0.0
    %1157 = vmatpush.xpose.msra.mxu0 0.0
    %1158 = vmatpush.xpose.msra.mxu0 0.0
    %1159 = vmatpush.xpose.msra.mxu0 0.0
    %1160 = vmatpush.xpose.msra.mxu0 0.0
    %1161 = vmatpush.xpose.msra.mxu0 0.0
    %1162 = vmatpush.xpose.msra.mxu0 0.0
    %1163 = vmatpush.xpose.msra.mxu0 %v1119
    %1164 = vmatmul.f32.gmra.mxu0 %v1133
    %v1165 = vpop.f32.mrf.mxu0
    %v1166 = vadd.f32 0.0, %v1165
    %1167 = vdwg.mxu0
    %v1168 = vstv %s81
    %v1169 = vmul.f32 %v1166, %v1168
    %v1170 = vmul.f32 %v1133, %v1119
    %1171 = vadd.xlane.f32.xlu0 %v1170
    %v1172 = vpop.xlane.xlu0 %1171
    %v1173 = vmul.f32 %v1172, %v1168
    %vm1174 = vcmask 64512
    %v1175 = vsel %vm1174, %v1169, -inf
    %1176 = vmax.xlane.f32.xlu0 %v1175
    %v1177 = vpop.xlane.xlu0 %1176
    %v1178 = vsub.f32 %v1169, %v1177
    %v1179 = vmul.f32 %v1178, 1.442695
    %v1180 = vpow.pop %v1179
    %v1181 = vsel %vm1174, %v1180, 0.0
    %1182 = vadd.xlane.f32.xlu0 %v1181
    %v1183 = vpop.xlane.xlu0 %1182
    %v1184 = vlog2.pop %v1183
    %v1185 = vmul.f32 %v1184, 0.6931472
    %v1186 = vadd.f32 %v1185, %v1177
    %v1187 = vrot.slane %v1175, 4
    %v1188 = vmax.f32 %v1175, %v1187
    %v1189 = vrot.slane %v1188, 2
    %v1190 = vmax.f32 %v1188, %v1189
    %v1191 = vrot.slane %v1190, 1
    %v1192 = vmax.f32 %v1190, %v1191
    %v1193 = vsub.f32 %v1169, %v1192
    %v1194 = vmul.f32 %v1193, 1.442695
    %v1195 = vpow.pop %v1194
    %v1196 = vsel %vm1174, %v1195, 0.0
    %v1197 = vrot.slane %v1196, 4
    %v1198 = vadd.f32 %v1196, %v1197
    %v1199 = vrot.slane %v1198, 2
    %v1200 = vadd.f32 %v1198, %v1199
    %v1201 = vrot.slane %v1200, 1
    %v1202 = vadd.f32 %v1200, %v1201
    %v1203 = vlog2.pop %v1202
    %v1204 = vmul.f32 %v1203, 0.6931472
    %v1205 = vadd.f32 %v1204, %v1192
    %vm1206 = vcmask 7168
    %v1207 = vsel %vm1206, %v1186, 0.0
    %1208 = vadd.xlane.f32.xlu0 %v1207
    %v1209 = vpop.xlane.xlu0 %1208
    %v1210 = vrot.slane %v1209, 4
    %v1211 = vadd.f32 %v1209, %v1210
    %v1212 = vrot.slane %v1211, 2
    %v1213 = vadd.f32 %v1211, %v1212
    %v1214 = vrot.slane %v1213, 1
    %v1215 = vadd.f32 %v1213, %v1214
    %s1216 = vtos %v1215
    %v1217 = vrcp.pop 8.0
    %v1218 = vmul.f32 8.0, %v1217
    %v1219 = vsub.f32 1.0, %v1218
    %v1220 = vmul.f32 %v1217, %v1219
    %v1221 = vadd.f32 %v1217, %v1220
    %vm1222 = vweird.f32 %v1217
    %v1223 = vsel %vm1222, %v1217, %v1221
    %s1224 = vtos %v1223
    %s1225 = smul.f32 %s1216, %s1224
    %vm1226 = vcmask 57344
    %v1227 = vsel %vm1226, %v1205, 0.0
    %1228 = vadd.xlane.f32.xlu0 %v1227
    %v1229 = vpop.xlane.xlu0 %1228
    %v1230 = vrot.slane %v1229, 4
    %v1231 = vadd.f32 %v1229, %v1230
    %v1232 = vrot.slane %v1231, 2
    %v1233 = vadd.f32 %v1231, %v1232
    %v1234 = vrot.slane %v1233, 1
    %v1235 = vadd.f32 %v1233, %v1234
    %s1236 = vtos %v1235
    %v1237 = vrcp.pop 8.0
    %v1238 = vmul.f32 8.0, %v1237
    %v1239 = vsub.f32 1.0, %v1238
    %v1240 = vmul.f32 %v1237, %v1239
    %v1241 = vadd.f32 %v1237, %v1240
    %vm1242 = vweird.f32 %v1237
    %v1243 = vsel %vm1242, %v1237, %v1241
    %s1244 = vtos %v1243
    %s1245 = smul.f32 %s1236, %s1244
    %s1246 = sadd.f32 %s1225, %s1245
    %s1247 = smul.f32 %s1246, 0.5
    %v1248 = vsel %vm1206, %v1173, 0.0
    %1249 = vadd.xlane.f32.xlu0 %v1248
    %v1250 = vpop.xlane.xlu0 %1249
    %v1251 = vrot.slane %v1250, 4
    %v1252 = vadd.f32 %v1250, %v1251
    %v1253 = vrot.slane %v1252, 2
    %v1254 = vadd.f32 %v1252, %v1253
    %v1255 = vrot.slane %v1254, 1
    %v1256 = vadd.f32 %v1254, %v1255
    %s1257 = vtos %v1256
    %v1258 = vrcp.pop 8.0
    %v1259 = vmul.f32 8.0, %v1258
    %v1260 = vsub.f32 1.0, %v1259
    %v1261 = vmul.f32 %v1258, %v1260
    %v1262 = vadd.f32 %v1258, %v1261
    %vm1263 = vweird.f32 %v1258
    %v1264 = vsel %vm1263, %v1258, %v1262
    %s1265 = vtos %v1264
    %s1266 = smul.f32 %s1257, %s1265
    %s1267 = ssub.f32 %s1247, %s1266
    %1268 = vmatpush.xpose.msra.mxu0 0.0
    %1269 = vmatpush.xpose.msra.mxu0 0.0
    %1270 = vmatpush.xpose.msra.mxu0 0.0
    %1271 = vmatpush.xpose.msra.mxu0 0.0
    %1272 = vmatpush.xpose.msra.mxu0 0.0
    %1273 = vmatpush.xpose.msra.mxu0 0.0
    %1274 = vmatpush.xpose.msra.mxu0 0.0
    %1275 = vmatpush.xpose.msra.mxu0 0.0
    %1276 = vmatpush.xpose.msra.mxu0 0.0
    %1277 = vmatpush.xpose.msra.mxu0 0.0
    %1278 = vmatpush.xpose.msra.mxu0 0.0
    %1279 = vmatpush.xpose.msra.mxu0 0.0
    %1280 = vmatpush.xpose.msra.mxu0 0.0
    %1281 = vmatpush.xpose.msra.mxu0 0.0
    %1282 = vmatpush.xpose.msra.mxu0 0.0
    %1283 = vmatpush.xpose.msra.mxu0 %v1147
    %1284 = vmatmul.f32.gmra.mxu0 %v1119
    %v1285 = vpop.f32.mrf.mxu0
    %v1286 = vadd.f32 0.0, %v1285
    %1287 = vdwg.mxu0
    %v1288 = vmul.f32 %v1286, %v1168
    %v1289 = vld [vmem:[%s8] sm:$0xff]
    %1291 = vrot.lane.b32.xlu0 %v1288, 124
    %v1292 = vpop.permute.xlu0 %1291
    %v1294 = vmax.f32 %v1288, %v1292
    %v1295 = vsub.f32 %v1288, %v1294
    %v1296 = vmul.f32 %v1295, 1.442695
    %v1297 = vpow.pop %v1296
    %1299 = vrot.lane.b32.xlu0 %v1294, 4
    %v1300 = vpop.permute.xlu0 %1299
    %v1302 = vsub.f32 %v1288, %v1300
    %v1303 = vmul.f32 %v1302, 1.442695
    %v1304 = vpow.pop %v1303
    %1306 = vrot.lane.b32.xlu0 %v1304, 124
    %v1307 = vpop.permute.xlu0 %1306
    %v1309 = vadd.f32 %v1297, %v1307
    %v1310 = vlog2.pop %v1309
    %v1311 = vmul.f32 %v1310, 0.6931472
    %v1312 = vadd.f32 %v1311, %v1294
    %vm1313 = vcmp.gt.f32.partialorder %v1289, 0.5
    %v1314 = vsel %vm1313, %v1292, %v1288
    %v1315 = vsub.f32 %v1312, %v1314
    %vm1316 = vcmask 31744
    %v1317 = vsel %vm1316, %v1315, 0.0
    %1318 = vadd.xlane.f32.xlu0 %v1317
    %v1319 = vpop.xlane.xlu0 %1318
    %v1320 = vrot.slane %v1319, 4
    %v1321 = vadd.f32 %v1319, %v1320
    %v1322 = vrot.slane %v1321, 2
    %v1323 = vadd.f32 %v1321, %v1322
    %v1324 = vrot.slane %v1323, 1
    %v1325 = vadd.f32 %v1323, %v1324
    %s1326 = vtos %v1325
    %v1327 = vrcp.pop 32.0
    %v1328 = vmul.f32 32.0, %v1327
    %v1329 = vsub.f32 1.0, %v1328
    %v1330 = vmul.f32 %v1327, %v1329
    %v1331 = vadd.f32 %v1327, %v1330
    %vm1332 = vweird.f32 %v1327
    %v1333 = vsel %vm1332, %v1327, %v1331
    %s1334 = vtos %v1333
    %s1335 = smul.f32 %s1326, %s1334
    %s1336 = smul.f32 %s82, %s1267
    %s1337 = ssub.f32 1.0, %s82
    %s1338 = smul.f32 %s1337, %s1335
    %s1339 = sadd.f32 %s1336, %s1338
    %s1340 = scalar_lea.smem [#allocation10], 0
    %1341 = sst [smem:[%s1340]] %s1339
    // Predicated region
    $region50: #{tpu_custom_call.1} parent=1 // pred_check
      _
    $region51: #{tpu_custom_call.1} parent=1 // pred_check_branch
      %1343 = sbr.rel (0) target = $region53
    $region52: #{tpu_custom_call.1} parent=1 // pred_region
      %1345 = vsyncadd [#allocation6], 0
      %s1347 = sshll.u32 %s9, 4
      %s1348 = int_to_ptr.hbm [resolvable:$true] %s1347
      %1350 = dma.smem_to_hbm [#allocation10], 16, %s1348, [#allocation6]
    $region53: #{tpu_custom_call.1} parent=1 // pred_fallthru
      _
    // Predicated region
    $region54: #{tpu_custom_call.1} parent=1 // pred_check
      _
    $region55: #{tpu_custom_call.1} parent=1 // pred_check_branch
      %1352 = sbr.rel (0) target = $region57
    $region56: #{tpu_custom_call.1} parent=1 // pred_region
      %1354 = dma.done [#allocation6], 16
    $region57: #{tpu_custom_call.1} parent=1 // pred_fallthru
      _
    %1355 = sfence
    %1356 = vsyncpa [#allocation5], 1
    %1357 = vsyncpa [#allocation8], 1
    %1358 = vsyncpa [#allocation6], 1

</llo_original>
